<compile_context>
chip_gen: v7x
topology: tpu7x:2x2x1
jax: 0.10.0
libtpu: 0.0.40
codegen_flags: <defaults>
</compile_context>

<pallas_src>
import functools
import math

import jax
import jax.numpy as jnp
from jax.experimental import pallas as pl
from jax.experimental.pallas import tpu as pltpu

_LANE = 128      # last-dim blocks must be multiples of this (or the full dim)
_SUBLANE = 8


def _round_up(x, m):
    return ((x + m - 1) // m) * m


def _svp_eval_kernel(h_ref, rt_ref, o_ref):
    # (tile_m, K) @ (K, N) on the MXU with f32 accumulation.
    o_ref[...] = jnp.dot(
        h_ref[...], rt_ref[...], preferred_element_type=jnp.float32
    ).astype(o_ref.dtype)


def _svp_train_kernel(h_ref, bits_ref, rt_ref, o_ref, *, threshold, scale):
    # Integer-threshold dropout: keep each element with prob (1 - p).
    keep = bits_ref[...] >= jnp.uint32(threshold)
    h = jnp.where(keep, h_ref[...], jnp.zeros((), dtype=h_ref.dtype))
    acc = jnp.dot(h, rt_ref[...], preferred_element_type=jnp.float32)
    # 1/(1-p) rescale applied to the small (tile_m, N) f32 tile, not per input
    # element.
    o_ref[...] = (acc * jnp.float32(scale)).astype(o_ref.dtype)


def prepare_projection(R, compute_dtype=jnp.bfloat16):
    """One-time prep of the fixed projection buffer: transpose + pad + cast.

    R is a registered buffer in the PyTorch module; in a real model call this
    once at init and reuse the result for every forward.
    """
    proj_dim, in_dim = R.shape
    k_pad = _round_up(in_dim, _LANE)
    n_pad = _round_up(proj_dim, _LANE)
    rt = jnp.zeros((k_pad, n_pad), dtype=compute_dtype)
    rt = rt.at[:in_dim, :proj_dim].set(R.T.astype(compute_dtype))
    return rt


def svp_layer(h, R, *, dropout_p=0.1, training=False, seed=0, tile_m=256,
              rt_prepared=None, compute_dtype=jnp.bfloat16):
    """JAX wrapper mirroring SVPLayer.forward.

    h: (..., in_dim)       float32
    R: (proj_dim, in_dim)  float32 (registered buffer)
    returns: (..., proj_dim) with h's dtype
    """
    in_dim = h.shape[-1]
    proj_dim = R.shape[0]
    lead_shape = h.shape[:-1]
    M = int(math.prod(lead_shape)) if lead_shape else 1

    assert tile_m % _SUBLANE == 0, "tile_m must be a multiple of 8"
    k_pad = _round_up(in_dim, _LANE)
    n_pad = _round_up(proj_dim, _LANE)
    m_pad = _round_up(max(M, 1), tile_m)

    rt = prepare_projection(R, compute_dtype) if rt_prepared is None else rt_prepared
    assert rt.shape == (k_pad, n_pad), "rt_prepared has wrong padded shape"

    h2d = h.reshape(M, in_dim)
    h_pad = jnp.pad(
        h2d, ((0, m_pad - M), (0, k_pad - in_dim))
    ).astype(compute_dtype)

    use_dropout = bool(training) and float(dropout_p) > 0.0

    grid = (m_pad // tile_m,)
    h_spec = pl.BlockSpec((tile_m, k_pad), lambda i: (i, 0))
    rt_spec = pl.BlockSpec((k_pad, n_pad), lambda i: (0, 0))   # grid-invariant
    out_spec = pl.BlockSpec((tile_m, n_pad), lambda i: (i, 0))
    out_shape = jax.ShapeDtypeStruct((m_pad, n_pad), h.dtype)

    # VMEM budget (all operands double-buffered by the pipeline); raise the
    # scoped limit explicitly so larger tiles also work on v5e (16 MiB default)
    # while staying under v7x's 64 MiB physical VMEM.
    op_bytes = jnp.dtype(compute_dtype).itemsize
    out_bytes = jnp.dtype(h.dtype).itemsize
    need = 2 * tile_m * k_pad * op_bytes          # h tiles
    need += 2 * k_pad * n_pad * op_bytes          # Rt
    need += 2 * tile_m * n_pad * out_bytes        # output tiles
    if use_dropout:
        need += 2 * tile_m * k_pad * 4            # uint32 dropout bits
    vmem_limit = int(min(max(4 * need, 16 * 1024 * 1024), 64 * 1024 * 1024))

    compiler_params = pltpu.CompilerParams(
        dimension_semantics=("parallel",),   # M tiles independent (2 TCs on v7x)
        vmem_limit_bytes=vmem_limit,
    )

    if use_dropout:
        # XLA-side random bits (no pltpu.prng_* -> also runs under interpret
        # mode); one uint32 per padded input element, thresholded in-kernel.
        threshold = min(int(round(float(dropout_p) * 4294967296.0)), 4294967295)
        scale = 1.0 / (1.0 - float(dropout_p))
        bits = jax.random.bits(
            jax.random.PRNGKey(seed), (m_pad, k_pad), dtype=jnp.uint32
        )
        kernel = functools.partial(
            _svp_train_kernel, threshold=threshold, scale=scale
        )
        bits_spec = pl.BlockSpec((tile_m, k_pad), lambda i: (i, 0))
        out = pl.pallas_call(
            kernel,
            out_shape=out_shape,
            grid_spec=pltpu.PrefetchScalarGridSpec(
                num_scalar_prefetch=0,
                grid=grid,
                in_specs=[h_spec, bits_spec, rt_spec],
                out_specs=out_spec,
            ),
            compiler_params=compiler_params,
        )(h_pad, bits, rt)
    else:
        out = pl.pallas_call(
            _svp_eval_kernel,
            out_shape=out_shape,
            grid_spec=pltpu.PrefetchScalarGridSpec(
                num_scalar_prefetch=0,
                grid=grid,
                in_specs=[h_spec, rt_spec],
                out_specs=out_spec,
            ),
            compiler_params=compiler_params,
        )(h_pad, rt)

    return out[:M, :proj_dim].reshape(*lead_shape, proj_dim)


if __name__ == "__main__":
    # Small shapes consistent with the module: h is (batch, seq, in_dim).
    B, S, in_dim, proj_dim = 2, 8, 32, 32
    dropout_p = 0.1
    tile_m = 256

    key = jax.random.PRNGKey(0)
    kh, kr = jax.random.split(key)
    h = jax.random.normal(kh, (B, S, in_dim), dtype=jnp.float32)
    # Registered buffer R = randn(proj, in) / sqrt(proj).
    R = jax.random.normal(kr, (proj_dim, in_dim), dtype=jnp.float32) / math.sqrt(
        proj_dim
    )

    # One-time projection prep (transpose + pad + bf16 cast), reused below.
    rt = prepare_projection(R)

    # bf16-faithful references (the kernel computes in bf16 with f32 accum).
    h_bf = h.astype(jnp.bfloat16).astype(jnp.float32)
    R_bf = R.astype(jnp.bfloat16).astype(jnp.float32)

    # ---- eval mode: dropout is identity, deterministic ----
    v = svp_layer(h, R, dropout_p=dropout_p, training=False, tile_m=tile_m,
                  rt_prepared=rt)
    v = jax.block_until_ready(v)
    v_ref = jnp.einsum("bsd,pd->bsp", h_bf, R_bf)
    assert v.shape == (B, S, proj_dim)
    assert jnp.allclose(v, v_ref, atol=2e-3, rtol=2e-3), "eval-mode mismatch"

    # ---- training mode: reconstruct the dropout mask from the same seed ----
    seed = 123
    v_train = svp_layer(h, R, dropout_p=dropout_p, training=True, seed=seed,
                        tile_m=tile_m, rt_prepared=rt)
    v_train = jax.block_until_ready(v_train)
    assert v_train.shape == (B, S, proj_dim)

    M = B * S
    m_pad = _round_up(M, tile_m)
    k_pad = _round_up(in_dim, _LANE)
    bits = jax.random.bits(jax.random.PRNGKey(seed), (m_pad, k_pad),
                           dtype=jnp.uint32)
    thr = jnp.uint32(min(int(round(dropout_p * 4294967296.0)), 4294967295))
    keep = (bits[:M, :in_dim] >= thr).reshape(B, S, in_dim)
    v_train_ref = jnp.einsum(
        "bsd,pd->bsp", jnp.where(keep, h_bf, 0.0), R_bf
    ) * jnp.float32(1.0 / (1.0 - dropout_p))
    assert jnp.allclose(v_train, v_train_ref, atol=2e-3, rtol=2e-3), \
        "train-mode mismatch"

    print("KERNEL_OK")
</pallas_src>

<mosaic_0001>
module attributes {stable_mosaic.version = 11 : i64} {
  func.func @_svp_eval_kernel(%arg0: i32, %arg1: memref<256x128xbf16, #tpu.memory_space<vmem>>, %arg2: memref<128x128xbf16, #tpu.memory_space<vmem>>, %arg3: memref<256x128xf32, #tpu.memory_space<vmem>>) attributes {dimension_semantics = [#tpu.dimension_semantics<parallel>], iteration_bounds = array<i64: 1>, scalar_prefetch = 0 : i64, scratch_operands = 0 : i64, tpu.core_type = #tpu.core_type<tc>, window_params = [{transform_indices = @transform_0, window_bounds = array<i64: 256, 128>}, {pipeline_mode = #tpu.pipeline_mode<synchronous>, transform_indices = @transform_1, window_bounds = array<i64: 128, 128>}, {transform_indices = @transform_2, window_bounds = array<i64: 256, 128>}]} {
    %c0 = arith.constant 0 : index
    %c0_0 = arith.constant 0 : index
    %0 = vector.load %arg1[%c0, %c0_0] : memref<256x128xbf16, #tpu.memory_space<vmem>>, vector<256x128xbf16>
    %c0_1 = arith.constant 0 : index
    %c0_2 = arith.constant 0 : index
    %1 = vector.load %arg2[%c0_1, %c0_2] : memref<128x128xbf16, #tpu.memory_space<vmem>>, vector<128x128xbf16>
    %cst = arith.constant dense<0.000000e+00> : vector<256x128xf32>
    %2 = tpu.matmul %0, %1, %cst {dimension_numbers = #tpu.dot_dimension_numbers<[1], [0], [0], [1], [0, 0, 1, 1], [], []>} : vector<256x128xbf16>, vector<128x128xbf16>, vector<256x128xf32> -> vector<256x128xf32>
    %c0_3 = arith.constant 0 : index
    %c0_4 = arith.constant 0 : index
    %3 = vector.load %arg3[%c0_3, %c0_4] : memref<256x128xf32, #tpu.memory_space<vmem>>, vector<256x128xf32>
    tpu.vector_store %arg3[%c0_3, %c0_4], %2 {strides = array<i32>} : memref<256x128xf32, #tpu.memory_space<vmem>>, vector<256x128xf32>,
    return
  }
  func.func @transform_0(%arg0: i32) -> (i32, i32) {
    %c0_i32 = arith.constant 0 : i32
    %c0_i32_0 = arith.constant 0 : i32
    return %arg0, %c0_i32 : i32, i32
  }
  func.func @transform_1(%arg0: i32) -> (i32, i32) {
    %c0_i32 = arith.constant 0 : i32
    %c0_i32_0 = arith.constant 0 : i32
    %c0_i32_1 = arith.constant 0 : i32
    return %c0_i32, %c0_i32_0 : i32, i32
  }
  func.func @transform_2(%arg0: i32) -> (i32, i32) {
    %c0_i32 = arith.constant 0 : i32
    %c0_i32_0 = arith.constant 0 : i32
    return %arg0, %c0_i32 : i32, i32
  }
}

</mosaic_0001>

<llo_original>
// kernel: tpu_custom_call.1
$region0: #{tpu_custom_call.1}
  #allocation0 [shape = 'u32[]', space=smem, size = 0x4, offset = 0x4, fixed_abs, tag = 'smem constant byte address 0x4 - core index']
  #allocation1 [shape = 'u32[144,128]{1,0:T(1,128)}', space=vmem, size = 0x12000, scoped, tag = 'internal scratch']
  %s0 = inlined_call_operand.hbm [shape: bf16[256,128], index: 0, kind: input, shape index: {}]
  %s1 = inlined_call_operand.hbm [shape: bf16[128,128], index: 1, kind: input, shape index: {}]
  %s2 = inlined_call_operand.hbm [shape: f32[256,128], index: 2, kind: output, shape index: {}]
  %s3 = sld [smem:[#allocation0]]
  $region26: #{tpu_custom_call.1} parent=0
    _
  %s5 = ssub.s32 1, %s3
  %s6 = scalar_select 0, %s5, %s3
  $region1: #{tpu_custom_call.1} parent=0
    #allocation2 [shape = 'u8[65536]{0}', space=vmem, size = 0x10000, scoped, tag = 'input window, operand 0, single buffered']
    #allocation3 [shape = 's32[1]{0}', space=sflag, size = 0x4, scoped, tag = 'scoped memory for tpu_custom_call.1']
    #allocation4 [shape = 's32[1]{0}', space=sflag, size = 0x4, scoped, tag = 'scoped memory for tpu_custom_call.1']
    #allocation5 [shape = 'u8[32768]{0}', space=vmem, size = 0x8000, scoped, tag = 'input window, operand 1, single buffered']
    #allocation6 [shape = 's32[1]{0}', space=sflag, size = 0x4, scoped, tag = 'scoped memory for tpu_custom_call.1']
    #allocation7 [shape = 'u8[131072]{0}', space=vmem, size = 0x20000, scoped, tag = 'output window, operand 0, single buffered']
    %7 = vsyncpa [#allocation3], 0
    %8 = vsyncpa [#allocation6], 0
    %9 = vsyncpa [#allocation4], 0
    // Predicated region
    $region2: #{tpu_custom_call.1} parent=1 // pred_check
      _
    $region3: #{tpu_custom_call.1} parent=1 // pred_check_branch
      %11 = sbr.rel (0) target = $region5
    $region4: #{tpu_custom_call.1} parent=1 // pred_region
      %s13 = ssub.s32 2048, 2048
      %14 = vsyncadd [#allocation3], %s13
      %s15 = sshll.u32 [#allocation2], 4
      %s16 = int_to_ptr.vmem [resolvable:$true] %s15
      %21 = dma.hbm_to_vmem [thread:$0]  %s0, 2048, %s16, [#allocation3], 64, 64, 4
    $region5: #{tpu_custom_call.1} parent=1 // pred_fallthru
      _
    // Predicated region
    $region6: #{tpu_custom_call.1} parent=1 // pred_check
      _
    $region7: #{tpu_custom_call.1} parent=1 // pred_check_branch
      %23 = sbr.rel (0) target = $region9
    $region8: #{tpu_custom_call.1} parent=1 // pred_region
      %s25 = ssub.s32 1024, 1024
      %26 = vsyncadd [#allocation6], %s25
      %s27 = sshll.u32 [#allocation5], 4
      %s28 = int_to_ptr.vmem [resolvable:$true] %s27
      %33 = dma.hbm_to_vmem [thread:$0]  %s1, 1024, %s28, [#allocation6], 64, 64, 4
    $region9: #{tpu_custom_call.1} parent=1 // pred_fallthru
      _
    // Predicated region
    $region10: #{tpu_custom_call.1} parent=1 // pred_check
      _
    $region11: #{tpu_custom_call.1} parent=1 // pred_check_branch
      %35 = sbr.rel (0) target = $region13
    $region12: #{tpu_custom_call.1} parent=1 // pred_region
      %36 = dma.done [#allocation3], 2048
    $region13: #{tpu_custom_call.1} parent=1 // pred_fallthru
      _
    // Predicated region
    $region14: #{tpu_custom_call.1} parent=1 // pred_check
      _
    $region15: #{tpu_custom_call.1} parent=1 // pred_check_branch
      %38 = sbr.rel (0) target = $region17
    $region16: #{tpu_custom_call.1} parent=1 // pred_region
      %39 = dma.done [#allocation6], 1024
    $region17: #{tpu_custom_call.1} parent=1 // pred_fallthru
      _
    %v41 = vld [vmem:[#allocation2] sm:$0xf]
    %v42 = vld [vmem:[#allocation2 + $0x4] sm:$0xf]
    %v43 = vld [vmem:[#allocation2 + $0x8] sm:$0xf]
    %v44 = vld [vmem:[#allocation2 + $0xc] sm:$0xf]
    %v45 = vld [vmem:[#allocation2 + $0x10] sm:$0xf]
    %v46 = vld [vmem:[#allocation2 + $0x14] sm:$0xf]
    %v47 = vld [vmem:[#allocation2 + $0x18] sm:$0xf]
    %v48 = vld [vmem:[#allocation2 + $0x1c] sm:$0xf]
    %v49 = vld [vmem:[#allocation2 + $0x20] sm:$0xf]
    %v50 = vld [vmem:[#allocation2 + $0x24] sm:$0xf]
    %v51 = vld [vmem:[#allocation2 + $0x28] sm:$0xf]
    %v52 = vld [vmem:[#allocation2 + $0x2c] sm:$0xf]
    %v53 = vld [vmem:[#allocation2 + $0x30] sm:$0xf]
    %v54 = vld [vmem:[#allocation2 + $0x34] sm:$0xf]
    %v55 = vld [vmem:[#allocation2 + $0x38] sm:$0xf]
    %v56 = vld [vmem:[#allocation2 + $0x3c] sm:$0xf]
    %v57 = vld [vmem:[#allocation2 + $0x40] sm:$0xf]
    %v58 = vld [vmem:[#allocation2 + $0x44] sm:$0xf]
    %v59 = vld [vmem:[#allocation2 + $0x48] sm:$0xf]
    %v60 = vld [vmem:[#allocation2 + $0x4c] sm:$0xf]
    %v61 = vld [vmem:[#allocation2 + $0x50] sm:$0xf]
    %v62 = vld [vmem:[#allocation2 + $0x54] sm:$0xf]
    %v63 = vld [vmem:[#allocation2 + $0x58] sm:$0xf]
    %v64 = vld [vmem:[#allocation2 + $0x5c] sm:$0xf]
    %v65 = vld [vmem:[#allocation2 + $0x60] sm:$0xf]
    %v66 = vld [vmem:[#allocation2 + $0x64] sm:$0xf]
    %v67 = vld [vmem:[#allocation2 + $0x68] sm:$0xf]
    %v68 = vld [vmem:[#allocation2 + $0x6c] sm:$0xf]
    %v69 = vld [vmem:[#allocation2 + $0x70] sm:$0xf]
    %v70 = vld [vmem:[#allocation2 + $0x74] sm:$0xf]
    %v71 = vld [vmem:[#allocation2 + $0x78] sm:$0xf]
    %v72 = vld [vmem:[#allocation2 + $0x7c] sm:$0xf]
    %v73 = vld [vmem:[#allocation5] sm:$0xf]
    %v74 = vld [vmem:[#allocation5 + $0x4] sm:$0xf]
    %v75 = vld [vmem:[#allocation5 + $0x8] sm:$0xf]
    %v76 = vld [vmem:[#allocation5 + $0xc] sm:$0xf]
    %v77 = vld [vmem:[#allocation5 + $0x10] sm:$0xf]
    %v78 = vld [vmem:[#allocation5 + $0x14] sm:$0xf]
    %v79 = vld [vmem:[#allocation5 + $0x18] sm:$0xf]
    %v80 = vld [vmem:[#allocation5 + $0x1c] sm:$0xf]
    %v81 = vld [vmem:[#allocation5 + $0x20] sm:$0xf]
    %v82 = vld [vmem:[#allocation5 + $0x24] sm:$0xf]
    %v83 = vld [vmem:[#allocation5 + $0x28] sm:$0xf]
    %v84 = vld [vmem:[#allocation5 + $0x2c] sm:$0xf]
    %v85 = vld [vmem:[#allocation5 + $0x30] sm:$0xf]
    %v86 = vld [vmem:[#allocation5 + $0x34] sm:$0xf]
    %v87 = vld [vmem:[#allocation5 + $0x38] sm:$0xf]
    %v88 = vld [vmem:[#allocation5 + $0x3c] sm:$0xf]
    %v121 = vunpack.c.l.b16 %v41
    %v122 = vunpack.c.l.b16 %v42
    %v123 = vunpack.c.l.b16 %v43
    %v124 = vunpack.c.l.b16 %v44
    %v125 = vunpack.c.l.b16 %v45
    %v126 = vunpack.c.l.b16 %v46
    %v127 = vunpack.c.l.b16 %v47
    %v128 = vunpack.c.l.b16 %v48
    %v129 = vunpack.c.l.b16 %v49
    %v130 = vunpack.c.l.b16 %v50
    %v131 = vunpack.c.l.b16 %v51
    %v132 = vunpack.c.l.b16 %v52
    %v133 = vunpack.c.l.b16 %v53
    %v134 = vunpack.c.l.b16 %v54
    %v135 = vunpack.c.l.b16 %v55
    %v136 = vunpack.c.l.b16 %v56
    %v137 = vunpack.c.l.b16 %v57
    %v138 = vunpack.c.l.b16 %v58
    %v139 = vunpack.c.l.b16 %v59
    %v140 = vunpack.c.l.b16 %v60
    %v141 = vunpack.c.l.b16 %v61
    %v142 = vunpack.c.l.b16 %v62
    %v143 = vunpack.c.l.b16 %v63
    %v144 = vunpack.c.l.b16 %v64
    %v145 = vunpack.c.l.b16 %v65
    %v146 = vunpack.c.l.b16 %v66
    %v147 = vunpack.c.l.b16 %v67
    %v148 = vunpack.c.l.b16 %v68
    %v149 = vunpack.c.l.b16 %v69
    %v150 = vunpack.c.l.b16 %v70
    %v151 = vunpack.c.l.b16 %v71
    %v152 = vunpack.c.l.b16 %v72
    %v153 = vpack.c.b16 %v122, %v121
    %v154 = vpack.c.b16 %v124, %v123
    %v155 = vpack.c.b16 %v126, %v125
    %v156 = vpack.c.b16 %v128, %v127
    %v157 = vpack.c.b16 %v130, %v129
    %v158 = vpack.c.b16 %v132, %v131
    %v159 = vpack.c.b16 %v134, %v133
    %v160 = vpack.c.b16 %v136, %v135
    %v161 = vpack.c.b16 %v138, %v137
    %v162 = vpack.c.b16 %v140, %v139
    %v163 = vpack.c.b16 %v142, %v141
    %v164 = vpack.c.b16 %v144, %v143
    %v165 = vpack.c.b16 %v146, %v145
    %v166 = vpack.c.b16 %v148, %v147
    %v167 = vpack.c.b16 %v150, %v149
    %v168 = vpack.c.b16 %v152, %v151
    %v201 = vunpack.c.l.b16 %v73
    %v202 = vunpack.c.l.b16 %v74
    %v203 = vunpack.c.l.b16 %v75
    %v204 = vunpack.c.l.b16 %v76
    %v205 = vunpack.c.l.b16 %v77
    %v206 = vunpack.c.l.b16 %v78
    %v207 = vunpack.c.l.b16 %v79
    %v208 = vunpack.c.l.b16 %v80
    %v209 = vunpack.c.l.b16 %v81
    %v210 = vunpack.c.l.b16 %v82
    %v211 = vunpack.c.l.b16 %v83
    %v212 = vunpack.c.l.b16 %v84
    %v213 = vunpack.c.l.b16 %v85
    %v214 = vunpack.c.l.b16 %v86
    %v215 = vunpack.c.l.b16 %v87
    %v216 = vunpack.c.l.b16 %v88
    %v217 = vpack.c.b16 %v202, %v201
    %v218 = vpack.c.b16 %v204, %v203
    %v219 = vpack.c.b16 %v206, %v205
    %v220 = vpack.c.b16 %v208, %v207
    %v221 = vpack.c.b16 %v210, %v209
    %v222 = vpack.c.b16 %v212, %v211
    %v223 = vpack.c.b16 %v214, %v213
    %v224 = vpack.c.b16 %v216, %v215
    %233 = vmatprep.subr.bf16.mxu0 0
    %234 = vmatpush1.bf16.msra.mxu0 %v217
    %235 = vmatprep.subr.bf16.mxu0 0
    %236 = vmatpush1.bf16.msra.mxu0 %v218
    %237 = vmatprep.subr.bf16.mxu0 0
    %238 = vmatpush1.bf16.msra.mxu0 %v219
    %239 = vmatprep.subr.bf16.mxu0 0
    %240 = vmatpush1.bf16.msra.mxu0 %v220
    %241 = vmatprep.subr.bf16.mxu0 0
    %242 = vmatpush1.bf16.msra.mxu0 %v221
    %243 = vmatprep.subr.bf16.mxu0 0
    %244 = vmatpush1.bf16.msra.mxu0 %v222
    %245 = vmatprep.subr.bf16.mxu0 0
    %246 = vmatpush1.bf16.msra.mxu0 %v223
    %247 = vmatprep.subr.bf16.mxu0 0
    %248 = vmatpush1.bf16.msra.mxu0 %v224
    %249 = vmatprep.subr.bf16.mxu0 0
    %250 = vmatpush1.bf16.msra.mxu0 0
    %251 = vmatprep.subr.bf16.mxu0 0
    %252 = vmatpush1.bf16.msra.mxu0 0
    %253 = vmatprep.subr.bf16.mxu0 0
    %254 = vmatpush1.bf16.msra.mxu0 0
    %255 = vmatprep.subr.bf16.mxu0 0
    %256 = vmatpush1.bf16.msra.mxu0 0
    %257 = vmatprep.subr.bf16.mxu0 0
    %258 = vmatpush1.bf16.msra.mxu0 0
    %259 = vmatprep.subr.bf16.mxu0 0
    %260 = vmatpush1.bf16.msra.mxu0 0
    %261 = vmatprep.subr.bf16.mxu0 0
    %262 = vmatpush1.bf16.msra.mxu0 0
    %263 = vmatprep.subr.bf16.mxu0 0
    %264 = vmatpush1.bf16.msra.mxu0 0
    %265 = vmatprep.mubr.bf16.mxu0 0
    %266 = vmatmul.mubr.bf16.gmra.mrb[0].mxu0 %v153
    %v267 = vpop.f32.mrb[0].mxu0
    %v268 = vadd.f32 0.0, %v267
    %v269 = vpop.f32.mrb[0].mxu0
    %v270 = vpop.f32.mrb[0].mxu0
    %v271 = vadd.f32 0.0, %v270
    %v272 = vpop.f32.mrb[0].mxu0
    %273 = vmatprep.mubr.bf16.mxu0 0
    %274 = vmatmul.mubr.bf16.gmra.mrb[0].mxu0 %v154
    %v275 = vpop.f32.mrb[0].mxu0
    %v276 = vadd.f32 0.0, %v275
    %v277 = vpop.f32.mrb[0].mxu0
    %v278 = vpop.f32.mrb[0].mxu0
    %v279 = vadd.f32 0.0, %v278
    %v280 = vpop.f32.mrb[0].mxu0
    %281 = vmatprep.mubr.bf16.mxu0 0
    %282 = vmatmul.mubr.bf16.gmra.mrb[0].mxu0 %v155
    %v283 = vpop.f32.mrb[0].mxu0
    %v284 = vadd.f32 0.0, %v283
    %v285 = vpop.f32.mrb[0].mxu0
    %v286 = vpop.f32.mrb[0].mxu0
    %v287 = vadd.f32 0.0, %v286
    %v288 = vpop.f32.mrb[0].mxu0
    %289 = vmatprep.mubr.bf16.mxu0 0
    %290 = vmatmul.mubr.bf16.gmra.mrb[0].mxu0 %v156
    %v291 = vpop.f32.mrb[0].mxu0
    %v292 = vadd.f32 0.0, %v291
    %v293 = vpop.f32.mrb[0].mxu0
    %v294 = vpop.f32.mrb[0].mxu0
    %v295 = vadd.f32 0.0, %v294
    %v296 = vpop.f32.mrb[0].mxu0
    %297 = vmatprep.mubr.bf16.mxu0 0
    %298 = vmatmul.mubr.bf16.gmra.mrb[0].mxu0 %v157
    %v299 = vpop.f32.mrb[0].mxu0
    %v300 = vadd.f32 0.0, %v299
    %v301 = vpop.f32.mrb[0].mxu0
    %v302 = vpop.f32.mrb[0].mxu0
    %v303 = vadd.f32 0.0, %v302
    %v304 = vpop.f32.mrb[0].mxu0
    %305 = vmatprep.mubr.bf16.mxu0 0
    %306 = vmatmul.mubr.bf16.gmra.mrb[0].mxu0 %v158
    %v307 = vpop.f32.mrb[0].mxu0
    %v308 = vadd.f32 0.0, %v307
    %v309 = vpop.f32.mrb[0].mxu0
    %v310 = vpop.f32.mrb[0].mxu0
    %v311 = vadd.f32 0.0, %v310
    %v312 = vpop.f32.mrb[0].mxu0
    %313 = vmatprep.mubr.bf16.mxu0 0
    %314 = vmatmul.mubr.bf16.gmra.mrb[0].mxu0 %v159
    %v315 = vpop.f32.mrb[0].mxu0
    %v316 = vadd.f32 0.0, %v315
    %v317 = vpop.f32.mrb[0].mxu0
    %v318 = vpop.f32.mrb[0].mxu0
    %v319 = vadd.f32 0.0, %v318
    %v320 = vpop.f32.mrb[0].mxu0
    %321 = vmatprep.mubr.bf16.mxu0 0
    %322 = vmatmul.mubr.bf16.gmra.mrb[0].mxu0 %v160
    %v323 = vpop.f32.mrb[0].mxu0
    %v324 = vadd.f32 0.0, %v323
    %v325 = vpop.f32.mrb[0].mxu0
    %v326 = vpop.f32.mrb[0].mxu0
    %v327 = vadd.f32 0.0, %v326
    %v328 = vpop.f32.mrb[0].mxu0
    %329 = vmatprep.mubr.bf16.mxu0 0
    %330 = vmatmul.mubr.bf16.gmra.mrb[0].mxu0 %v161
    %v331 = vpop.f32.mrb[0].mxu0
    %v332 = vadd.f32 0.0, %v331
    %v333 = vpop.f32.mrb[0].mxu0
    %v334 = vpop.f32.mrb[0].mxu0
    %v335 = vadd.f32 0.0, %v334
    %v336 = vpop.f32.mrb[0].mxu0
    %337 = vmatprep.mubr.bf16.mxu0 0
    %338 = vmatmul.mubr.bf16.gmra.mrb[0].mxu0 %v162
    %v339 = vpop.f32.mrb[0].mxu0
    %v340 = vadd.f32 0.0, %v339
    %v341 = vpop.f32.mrb[0].mxu0
    %v342 = vpop.f32.mrb[0].mxu0
    %v343 = vadd.f32 0.0, %v342
    %v344 = vpop.f32.mrb[0].mxu0
    %345 = vmatprep.mubr.bf16.mxu0 0
    %346 = vmatmul.mubr.bf16.gmra.mrb[0].mxu0 %v163
    %v347 = vpop.f32.mrb[0].mxu0
    %v348 = vadd.f32 0.0, %v347
    %v349 = vpop.f32.mrb[0].mxu0
    %v350 = vpop.f32.mrb[0].mxu0
    %v351 = vadd.f32 0.0, %v350
    %v352 = vpop.f32.mrb[0].mxu0
    %353 = vmatprep.mubr.bf16.mxu0 0
    %354 = vmatmul.mubr.bf16.gmra.mrb[0].mxu0 %v164
    %v355 = vpop.f32.mrb[0].mxu0
    %v356 = vadd.f32 0.0, %v355
    %v357 = vpop.f32.mrb[0].mxu0
    %v358 = vpop.f32.mrb[0].mxu0
    %v359 = vadd.f32 0.0, %v358
    %v360 = vpop.f32.mrb[0].mxu0
    %361 = vmatprep.mubr.bf16.mxu0 0
    %362 = vmatmul.mubr.bf16.gmra.mrb[0].mxu0 %v165
    %v363 = vpop.f32.mrb[0].mxu0
    %v364 = vadd.f32 0.0, %v363
    %v365 = vpop.f32.mrb[0].mxu0
    %v366 = vpop.f32.mrb[0].mxu0
    %v367 = vadd.f32 0.0, %v366
    %v368 = vpop.f32.mrb[0].mxu0
    %369 = vmatprep.mubr.bf16.mxu0 0
    %370 = vmatmul.mubr.bf16.gmra.mrb[0].mxu0 %v166
    %v371 = vpop.f32.mrb[0].mxu0
    %v372 = vadd.f32 0.0, %v371
    %v373 = vpop.f32.mrb[0].mxu0
    %v374 = vpop.f32.mrb[0].mxu0
    %v375 = vadd.f32 0.0, %v374
    %v376 = vpop.f32.mrb[0].mxu0
    %377 = vmatprep.mubr.bf16.mxu0 0
    %378 = vmatmul.mubr.bf16.gmra.mrb[0].mxu0 %v167
    %v379 = vpop.f32.mrb[0].mxu0
    %v380 = vadd.f32 0.0, %v379
    %v381 = vpop.f32.mrb[0].mxu0
    %v382 = vpop.f32.mrb[0].mxu0
    %v383 = vadd.f32 0.0, %v382
    %v384 = vpop.f32.mrb[0].mxu0
    %385 = vmatprep.mubr.bf16.mxu0 0
    %386 = vmatmul.mubr.bf16.gmra.mrb[0].mxu0 %v168
    %v387 = vpop.f32.mrb[0].mxu0
    %v388 = vadd.f32 0.0, %v387
    %v389 = vpop.f32.mrb[0].mxu0
    %v390 = vpop.f32.mrb[0].mxu0
    %v391 = vadd.f32 0.0, %v390
    %v392 = vpop.f32.mrb[0].mxu0
    %393 = vdwg.mxu0
    %394 = vst [vmem:[#allocation7] sm:$0xff] %v268
    %395 = vst [vmem:[#allocation7 + $0x8] sm:$0xff] %v271
    %396 = vst [vmem:[#allocation7 + $0x10] sm:$0xff] %v276
    %397 = vst [vmem:[#allocation7 + $0x18] sm:$0xff] %v279
    %398 = vst [vmem:[#allocation7 + $0x20] sm:$0xff] %v284
    %399 = vst [vmem:[#allocation7 + $0x28] sm:$0xff] %v287
    %400 = vst [vmem:[#allocation7 + $0x30] sm:$0xff] %v292
    %401 = vst [vmem:[#allocation7 + $0x38] sm:$0xff] %v295
    %402 = vst [vmem:[#allocation7 + $0x40] sm:$0xff] %v300
    %403 = vst [vmem:[#allocation7 + $0x48] sm:$0xff] %v303
    %404 = vst [vmem:[#allocation7 + $0x50] sm:$0xff] %v308
    %405 = vst [vmem:[#allocation7 + $0x58] sm:$0xff] %v311
    %406 = vst [vmem:[#allocation7 + $0x60] sm:$0xff] %v316
    %407 = vst [vmem:[#allocation7 + $0x68] sm:$0xff] %v319
    %408 = vst [vmem:[#allocation7 + $0x70] sm:$0xff] %v324
    %409 = vst [vmem:[#allocation7 + $0x78] sm:$0xff] %v327
    %410 = vst [vmem:[#allocation7 + $0x80] sm:$0xff] %v332
    %411 = vst [vmem:[#allocation7 + $0x88] sm:$0xff] %v335
    %412 = vst [vmem:[#allocation7 + $0x90] sm:$0xff] %v340
    %413 = vst [vmem:[#allocation7 + $0x98] sm:$0xff] %v343
    %414 = vst [vmem:[#allocation7 + $0xa0] sm:$0xff] %v348
    %415 = vst [vmem:[#allocation7 + $0xa8] sm:$0xff] %v351
    %416 = vst [vmem:[#allocation7 + $0xb0] sm:$0xff] %v356
    %417 = vst [vmem:[#allocation7 + $0xb8] sm:$0xff] %v359
    %418 = vst [vmem:[#allocation7 + $0xc0] sm:$0xff] %v364
    %419 = vst [vmem:[#allocation7 + $0xc8] sm:$0xff] %v367
    %420 = vst [vmem:[#allocation7 + $0xd0] sm:$0xff] %v372
    %421 = vst [vmem:[#allocation7 + $0xd8] sm:$0xff] %v375
    %422 = vst [vmem:[#allocation7 + $0xe0] sm:$0xff] %v380
    %423 = vst [vmem:[#allocation7 + $0xe8] sm:$0xff] %v383
    %424 = vst [vmem:[#allocation7 + $0xf0] sm:$0xff] %v388
    %425 = vst [vmem:[#allocation7 + $0xf8] sm:$0xff] %v391
    // Predicated region
    $region18: #{tpu_custom_call.1} parent=1 // pred_check
      _
    $region19: #{tpu_custom_call.1} parent=1 // pred_check_branch
      %427 = sbr.rel (0) target = $region21
    $region20: #{tpu_custom_call.1} parent=1 // pred_region
      %s429 = ssub.s32 4096, 4096
      %430 = vsyncadd [#allocation4], %s429
      %s431 = sshll.u32 [#allocation7], 4
      %s432 = int_to_ptr.vmem [resolvable:$true] %s431
      %437 = dma.vmem_to_hbm [thread:$0]  %s432, 4096, %s2, [#allocation4], 128, 128, 8
    $region21: #{tpu_custom_call.1} parent=1 // pred_fallthru
      _
    // Predicated region
    $region22: #{tpu_custom_call.1} parent=1 // pred_check
      _
    $region23: #{tpu_custom_call.1} parent=1 // pred_check_branch
      %439 = sbr.rel (0) target = $region25
    $region24: #{tpu_custom_call.1} parent=1 // pred_region
      %440 = dma.done [#allocation4], 4096
    $region25: #{tpu_custom_call.1} parent=1 // pred_fallthru
      _
    %441 = vsyncpa [#allocation3], 1
    %442 = vsyncpa [#allocation6], 1
    %443 = vsyncpa [#allocation4], 1

</llo_original>
